<compile_context>
chip_gen: v6e
topology: v6e:2x2x1
jax: 0.10.0
libtpu: 0.0.40
codegen_flags: <defaults>
</compile_context>

<pallas_src>
import jax
import jax.numpy as jnp
import numpy as np
from jax.experimental import pallas as pl
from jax.experimental.pallas import tpu as pltpu

_LANE = 128
_TILE_BYTES = 2 * 1024 * 1024   # ~2 MiB per buffer: >=85% of HBM roofline on
                                # v5e/v6e and safely inside every chip's default
                                # scoped VMEM with double buffering.


def _cdiv(a, b):
    return -(-a // b)


def _sublane_multiple(dtype):
    # f32 -> 8, bf16/f16 -> 16, int8/fp8 -> 32 (packed sublane layout).
    itemsize = jnp.dtype(dtype).itemsize
    return max(8, 32 // max(itemsize, 1))


def _drop_path_kernel(x_ref, f_ref, o_ref):
    # (TB, TN) tile of x times its per-sample keep factor (TB, 1), broadcast
    # across lanes, computed natively in x.dtype. Pure streaming multiply.
    o_ref[...] = x_ref[...] * f_ref[...]


def drop_path(x, drop_prob: float = 0.0, training: bool = False,
              scale_by_keep: bool = True, *, key=None, seed: int = 0):
    """Pallas-TPU drop_path matching the PyTorch reference semantics."""
    if drop_prob == 0.0 or not training:
        return x
    keep_prob = 1.0 - float(drop_prob)
    scale = (1.0 / keep_prob) if (scale_by_keep and keep_prob > 0.0) else 1.0

    orig_shape = x.shape
    B = int(x.shape[0])
    N = 1
    for d in x.shape[1:]:
        N *= int(d)

    x2 = x.reshape(B, N)

    # One Bernoulli(keep_prob) draw per sample, done in the wrapper (plain JAX),
    # scaled in x.dtype exactly like the torch reference.
    if key is None:
        key = jax.random.PRNGKey(seed)
    keep = jax.random.bernoulli(key, p=keep_prob, shape=(B,))
    factor = (keep.astype(x.dtype)
              * jnp.asarray(scale, dtype=x.dtype)).reshape(B, 1)

    # ---- tile sizing -------------------------------------------------------
    itemsize = jnp.dtype(x.dtype).itemsize
    sub = _sublane_multiple(x.dtype)
    max_elems = max(_TILE_BYTES // itemsize, sub * _LANE)

    if N < _LANE:
        TN = N                                           # full (small) lane dim
    else:
        cap_cols = max(_LANE, ((max_elems // sub) // _LANE) * _LANE)
        TN = min(cap_cols, (N // _LANE) * _LANE)         # multiple of 128, <= N

    rows_budget = max(1, max_elems // max(TN, 1))        # >= sub by construction
    if rows_budget >= B:
        TB = B                                           # full batch dim
    else:
        TB = max(sub, (rows_budget // sub) * sub)        # sublane-aligned chunk

    grid = (_cdiv(B, TB), _cdiv(N, TN))

    out = pl.pallas_call(
        _drop_path_kernel,
        out_shape=jax.ShapeDtypeStruct((B, N), x.dtype),
        grid=grid,
        in_specs=[
            pl.BlockSpec((TB, TN), lambda b, n: (b, n)),
            pl.BlockSpec((TB, 1), lambda b, n: (b, 0)),
        ],
        out_specs=pl.BlockSpec((TB, TN), lambda b, n: (b, n)),
        compiler_params=pltpu.CompilerParams(
            dimension_semantics=("parallel", "parallel")),
    )(x2, factor)

    return out.reshape(orig_shape)


class DropPath:
    """Drop paths (stochastic depth) per sample — Pallas-TPU forward."""

    def __init__(self, drop_prob: float = 0.0, scale_by_keep: bool = True):
        self.drop_prob = float(drop_prob)
        self.scale_by_keep = scale_by_keep

    def __call__(self, x, *, training: bool = False, key=None, seed: int = 0):
        return drop_path(x, self.drop_prob, training, self.scale_by_keep,
                         key=key, seed=seed)


def _ref_drop_path(x, drop_prob, training, scale_by_keep, key):
    """Pure-JAX reference with the same RNG stream as the kernel wrapper."""
    if drop_prob == 0.0 or not training:
        return x
    keep_prob = 1.0 - drop_prob
    keep = jax.random.bernoulli(key, p=keep_prob, shape=(x.shape[0],))
    scale = (1.0 / keep_prob) if (scale_by_keep and keep_prob > 0.0) else 1.0
    f = keep.astype(x.dtype) * jnp.asarray(scale, dtype=x.dtype)
    return x * f.reshape((-1,) + (1,) * (x.ndim - 1))


if __name__ == "__main__":
    root = jax.random.PRNGKey(0)
    kx, kd1, kd2, kd3, kd4 = jax.random.split(root, 5)

    # ---- training, scaled (N multiple of 128) ------------------------------
    x = jax.random.normal(kx, (2, 4, 16, 16), jnp.float32)
    out = jax.block_until_ready(
        DropPath(0.5, scale_by_keep=True)(x, training=True, key=kd1))
    ref = _ref_drop_path(x, 0.5, True, True, kd1)
    np.testing.assert_allclose(np.asarray(out), np.asarray(ref), rtol=1e-6, atol=0)
    xn, on = np.asarray(x), np.asarray(out)
    for b in range(x.shape[0]):
        kept = np.allclose(on[b], xn[b] * 2.0, rtol=1e-5, atol=1e-6)
        dropped = np.allclose(on[b], 0.0, atol=0.0)
        assert kept or dropped, f"sample {b}: invalid drop-path output"

    # ---- training, unscaled -------------------------------------------------
    out_ns = jax.block_until_ready(
        DropPath(0.5, scale_by_keep=False)(x, training=True, key=kd2))
    ref_ns = _ref_drop_path(x, 0.5, True, False, kd2)
    np.testing.assert_allclose(np.asarray(out_ns), np.asarray(ref_ns),
                               rtol=1e-6, atol=0)

    # ---- small non-128-multiple inner size (N=105 < lane width) -------------
    x_small = jax.random.normal(jax.random.PRNGKey(1), (2, 3, 5, 7), jnp.float32)
    out_small = jax.block_until_ready(
        DropPath(0.25, scale_by_keep=True)(x_small, training=True, key=kd3))
    ref_small = _ref_drop_path(x_small, 0.25, True, True, kd3)
    np.testing.assert_allclose(np.asarray(out_small), np.asarray(ref_small),
                               rtol=1e-6, atol=0)

    # ---- ragged column tile (N=200: 128-tile + masked 72 tail) --------------
    x_rag = jax.random.normal(jax.random.PRNGKey(2), (2, 4, 5, 10), jnp.float32)
    out_rag = jax.block_until_ready(
        DropPath(0.3, scale_by_keep=True)(x_rag, training=True, key=kd4))
    ref_rag = _ref_drop_path(x_rag, 0.3, True, True, kd4)
    np.testing.assert_allclose(np.asarray(out_rag), np.asarray(ref_rag),
                               rtol=1e-6, atol=0)

    # ---- bf16: multiply stays in x.dtype ------------------------------------
    x_bf = x.astype(jnp.bfloat16)
    out_bf = jax.block_until_ready(
        DropPath(0.5, scale_by_keep=True)(x_bf, training=True, key=kd1))
    ref_bf = _ref_drop_path(x_bf, 0.5, True, True, kd1)
    np.testing.assert_allclose(np.asarray(out_bf, dtype=np.float32),
                               np.asarray(ref_bf, dtype=np.float32),
                               rtol=1e-2, atol=1e-2)

    # ---- eval mode / drop_prob == 0 -> exact identity ------------------------
    np.testing.assert_array_equal(
        np.asarray(DropPath(0.5)(x, training=False)), xn)
    np.testing.assert_array_equal(
        np.asarray(DropPath(0.0)(x, training=True)), xn)

    print("KERNEL_OK")
</pallas_src>

<mosaic_0001>
module attributes {stable_mosaic.version = 11 : i64} {
  func.func @_drop_path_kernel(%arg0: i32, %arg1: i32, %arg2: memref<2x1024xf32, #tpu.memory_space<vmem>>, %arg3: memref<2x1xf32, #tpu.memory_space<vmem>>, %arg4: memref<2x1024xf32, #tpu.memory_space<vmem>>) attributes {dimension_semantics = [#tpu.dimension_semantics<parallel>, #tpu.dimension_semantics<parallel>], iteration_bounds = array<i64: 1, 1>, scalar_prefetch = 0 : i64, scratch_operands = 0 : i64, tpu.core_type = #tpu.core_type<tc>, window_params = [{transform_indices = @transform_0, window_bounds = array<i64: 2, 1024>}, {transform_indices = @transform_1, window_bounds = array<i64: 2, 1>}, {transform_indices = @transform_2, window_bounds = array<i64: 2, 1024>}]} {
    %c0 = arith.constant 0 : index
    %c0_0 = arith.constant 0 : index
    %0 = vector.load %arg2[%c0, %c0_0] : memref<2x1024xf32, #tpu.memory_space<vmem>>, vector<2x1024xf32>
    %c0_1 = arith.constant 0 : index
    %c0_2 = arith.constant 0 : index
    %1 = vector.load %arg3[%c0_1, %c0_2] : memref<2x1xf32, #tpu.memory_space<vmem>>, vector<2x1xf32>
    %2 = vector.broadcast %1 : vector<2x1xf32> to vector<2x1024xf32>
    %3 = arith.mulf %0, %2 : vector<2x1024xf32>
    %c0_3 = arith.constant 0 : index
    %c0_4 = arith.constant 0 : index
    %4 = vector.load %arg4[%c0_3, %c0_4] : memref<2x1024xf32, #tpu.memory_space<vmem>>, vector<2x1024xf32>
    tpu.vector_store %arg4[%c0_3, %c0_4], %3 {strides = array<i32>} : memref<2x1024xf32, #tpu.memory_space<vmem>>, vector<2x1024xf32>,
    return
  }
  func.func @transform_0(%arg0: i32, %arg1: i32) -> (i32, i32) {
    %c0_i32 = arith.constant 0 : i32
    return %arg0, %arg1 : i32, i32
  }
  func.func @transform_1(%arg0: i32, %arg1: i32) -> (i32, i32) {
    %c0_i32 = arith.constant 0 : i32
    %c0_i32_0 = arith.constant 0 : i32
    return %arg0, %c0_i32 : i32, i32
  }
  func.func @transform_2(%arg0: i32, %arg1: i32) -> (i32, i32) {
    %c0_i32 = arith.constant 0 : i32
    return %arg0, %arg1 : i32, i32
  }
}

</mosaic_0001>

<llo_original>
// kernel: tpu_custom_call.1
$region0: #{tpu_custom_call.1}
  #allocation0 [shape = 'u32[]', space=smem, size = 0x4, offset = 0x4, fixed_abs, tag = 'smem constant byte address 0x4 - core index']
  #allocation1 [shape = 'u32[144,128]{1,0:T(1,128)}', space=vmem, size = 0x12000, scoped, tag = 'internal scratch']
  %s0 = inlined_call_operand.hbm [shape: f32[2,1024], index: 0, kind: input, shape index: {}]
  %s1 = inlined_call_operand.vmem [shape: f32[2,1], index: 1, kind: input, shape index: {}]
  %s2 = inlined_call_operand.hbm [shape: f32[2,1024], index: 2, kind: output, shape index: {}]
  %s3 = sld [smem:[#allocation0]]
  $region22: #{tpu_custom_call.1} parent=0
    _
  %s5 = ssub.s32 1, %s3
  %s6 = scalar_select 0, %s5, %s3
  $region1: #{tpu_custom_call.1} parent=0
    #allocation2 [shape = 'u8[8192]{0}', space=vmem, size = 0x2000, scoped, tag = 'input window, operand 0, single buffered']
    #allocation3 [shape = 's32[1]{0}', space=sflag, size = 0x4, scoped, tag = 'scoped memory for tpu_custom_call.1']
    #allocation4 [shape = 's32[1]{0}', space=sflag, size = 0x4, scoped, tag = 'scoped memory for tpu_custom_call.1']
    #allocation5 [shape = 'u8[8192]{0}', space=vmem, size = 0x2000, scoped, tag = 'output window, operand 0, single buffered']
    %7 = vsyncpa [#allocation3], 0
    %8 = vsyncpa [#allocation4], 0
    // Predicated region
    $region2: #{tpu_custom_call.1} parent=1 // pred_check
      _
    $region3: #{tpu_custom_call.1} parent=1 // pred_check_branch
      %10 = sbr.rel (0) target = $region5
    $region4: #{tpu_custom_call.1} parent=1 // pred_region
      %s12 = ssub.s32 256, 256
      %13 = vsyncadd [#allocation3], %s12
      %s15 = sshll.u32 [#allocation2], 4
      %s16 = int_to_ptr.vmem [resolvable:$true] %s15
      %18 = dma.hbm_to_vmem [thread:$0]  %s0, 256, %s16, [#allocation3]
    $region5: #{tpu_custom_call.1} parent=1 // pred_fallthru
      _
    // Predicated region
    $region6: #{tpu_custom_call.1} parent=1 // pred_check
      _
    $region7: #{tpu_custom_call.1} parent=1 // pred_check_branch
      %20 = sbr.rel (0) target = $region9
    $region8: #{tpu_custom_call.1} parent=1 // pred_region
      _
    $region9: #{tpu_custom_call.1} parent=1 // pred_fallthru
      _
    // Predicated region
    $region10: #{tpu_custom_call.1} parent=1 // pred_check
      _
    $region11: #{tpu_custom_call.1} parent=1 // pred_check_branch
      %22 = sbr.rel (0) target = $region13
    $region12: #{tpu_custom_call.1} parent=1 // pred_region
      %23 = dma.done [#allocation3], 256
    $region13: #{tpu_custom_call.1} parent=1 // pred_fallthru
      _
    %v24 = vld [vmem:[#allocation2] sm:$0xff]
    %v25 = vld [vmem:[#allocation2 + $0x8] sm:$0xff]
    %v26 = vld [vmem:[%s1] sm:$0x3]
    %28 = vset.pattern.permute.xlu0 0
    %29 = vperm.xlu0 %28, %v26
    %v30 = vpop.permute.xlu0 %29
    %v32 = vunpack.c.l.s4 269488144
    %v33 = vunpack.c.0.s8 %v32
    %v34 = vlaneseq
    %v35 = vshrl.u32 %v34, 7
    %v36 = vsub.s32 %v33, %v35
    %v37 = vrot.slane %v30, %v36
    %v39 = vmul.f32 %v24, %v37
    %v40 = vmul.f32 %v25, %v37
    %41 = vst [vmem:[#allocation5] sm:$0xff] %v39
    %42 = vst [vmem:[#allocation5 + $0x8] sm:$0xff] %v40
    // Predicated region
    $region14: #{tpu_custom_call.1} parent=1 // pred_check
      _
    $region15: #{tpu_custom_call.1} parent=1 // pred_check_branch
      %44 = sbr.rel (0) target = $region17
    $region16: #{tpu_custom_call.1} parent=1 // pred_region
      %s46 = ssub.s32 256, 256
      %47 = vsyncadd [#allocation4], %s46
      %s49 = sshll.u32 [#allocation5], 4
      %s50 = int_to_ptr.vmem [resolvable:$true] %s49
      %52 = dma.vmem_to_hbm [thread:$0]  %s50, 256, %s2, [#allocation4]
    $region17: #{tpu_custom_call.1} parent=1 // pred_fallthru
      _
    // Predicated region
    $region18: #{tpu_custom_call.1} parent=1 // pred_check
      _
    $region19: #{tpu_custom_call.1} parent=1 // pred_check_branch
      %54 = sbr.rel (0) target = $region21
    $region20: #{tpu_custom_call.1} parent=1 // pred_region
      %55 = dma.done [#allocation4], 256
    $region21: #{tpu_custom_call.1} parent=1 // pred_fallthru
      _
    %56 = vsyncpa [#allocation3], 1
    %57 = vsyncpa [#allocation4], 1

</llo_original>
